<compile_context>
chip_gen: v5e
topology: v5e:2x2
jax: 0.10.0
libtpu: 0.0.40
codegen_flags: <defaults>
</compile_context>

<pallas_src>
import functools

import jax
import jax.numpy as jnp
import numpy as np
from jax.experimental import pallas as pl
from jax.experimental.pallas import tpu as pltpu

LANE = 128             # last dim -> 128-lane vreg axis
MAX_BLOCK_ROWS = 2048  # (2048,128) f32 = 1 MiB block; live temps + buffers ~14 MiB VMEM
VMEM_LIMIT_BYTES = 32 * 1024 * 1024


# ----------------------------- Pallas kernel ---------------------------------
def pade_rkan_kernel(cp_ref, cq_ref, wp_ref, wq_ref, x_ref, o_ref, *,
                     degree_p, degree_q):
    # cp_ref / cq_ref (SMEM f32): [zeta, c1_0, c1_1, b2_2, b3_2, b4_2, b2_3, ...]
    #   c1_* are the Jacobi P_1 coefficients; b*_n are the three-term recurrence
    #   coefficients already divided by a1 (precomputed in the wrapper).
    # wp_ref / wq_ref (SMEM f32): series weights.
    x = x_ref[...].astype(jnp.float32)

    # Numerically stable sigmoid sharing a single exp; divides go to the EUP.
    e = jnp.exp(-jnp.abs(x))              # in (0, 1], never overflows
    denom = 1.0 + e                       # in (1, 2]
    num = jnp.where(x >= 0, 1.0, e)
    s = num / denom                       # sigmoid(x), exact

    need_jacobi = (degree_p > 2) or (degree_q > 2)
    if need_jacobi:
        log_s = jnp.minimum(x, 0.0) - jnp.log(denom)   # log(sigmoid(x)), stable

    def series(c_ref, w_ref, degree):
        acc = w_ref[0] + w_ref[1] * s
        if degree > 2:
            zeta = c_ref[0]
            # shifted fractional Jacobi argument on [0,1]: t = 2*s**zeta - 1
            t = 2.0 * jnp.exp(zeta * log_s) - 1.0
            p_nm2 = jnp.ones_like(s)              # P_0
            p_nm1 = c_ref[1] + c_ref[2] * t       # P_1
            for idx in range(degree - 2):         # n = 2 .. degree-1
                base = 3 + 3 * idx
                b2 = c_ref[base]
                b3 = c_ref[base + 1]
                b4 = c_ref[base + 2]
                p_n = (b2 + b3 * t) * p_nm1 - b4 * p_nm2
                acc = acc + w_ref[idx + 2] * p_n
                p_nm2, p_nm1 = p_nm1, p_n
        return acc

    p = series(cp_ref, wp_ref, degree_p)
    q = series(cq_ref, wq_ref, degree_q)
    o_ref[...] = (p / q).astype(o_ref.dtype)      # exact EUP divide


# ----------------------------- helpers ----------------------------------------
def _jacobi_recurrence_coeffs(alpha, beta, zeta, degree):
    """[zeta, P1_const, P1_t, (a2/a1, a3/a1, a4/a1) for n=2..degree-1]."""
    vals = [zeta, 0.5 * (alpha - beta), 0.5 * (alpha + beta + 2.0)]
    for n in range(2, degree):
        nf = float(n)
        c = 2.0 * nf + alpha + beta
        a1 = 2.0 * nf * (nf + alpha + beta) * (c - 2.0)
        a2 = (c - 1.0) * (alpha * alpha - beta * beta)
        a3 = (c - 1.0) * c * (c - 2.0)
        a4 = 2.0 * (nf + alpha - 1.0) * (nf + beta - 1.0) * c
        inv_a1 = 1.0 / a1
        vals += [a2 * inv_a1, a3 * inv_a1, a4 * inv_a1]
    return jnp.stack(
        [jnp.asarray(v, jnp.float32).reshape(()) for v in vals]
    ).astype(jnp.float32)


def _pade_rkan_elementwise_jax(x, coeff_p, coeff_q, w_p, w_q, degree_p, degree_q):
    """Same math as the kernel in plain JAX (used for the tiny unaligned tail)."""
    xf = x.astype(jnp.float32)
    s = jax.nn.sigmoid(xf)
    log_s = jax.nn.log_sigmoid(xf)

    def series(c, w, degree):
        acc = w[0] + w[1] * s
        if degree > 2:
            t = 2.0 * jnp.exp(c[0] * log_s) - 1.0
            p_nm2 = jnp.ones_like(s)
            p_nm1 = c[1] + c[2] * t
            for idx in range(degree - 2):
                base = 3 + 3 * idx
                p_n = (c[base] + c[base + 1] * t) * p_nm1 - c[base + 2] * p_nm2
                acc = acc + w[idx + 2] * p_n
                p_nm2, p_nm1 = p_nm1, p_n
        return acc

    return (series(coeff_p, w_p, degree_p) /
            series(coeff_q, w_q, degree_q)).astype(x.dtype)


# ----------------------------- forward (jitted) -------------------------------
@functools.partial(jax.jit, static_argnames=("degree_p", "degree_q"))
def pade_rkan_forward(x, params, degree_p, degree_q):
    # The torch module's forward indexes w[1] unconditionally, so degree >= 2.
    if not (2 <= degree_p <= 6 and 2 <= degree_q <= 6):
        raise ValueError("degree_p and degree_q must be in [2, 6] for this kernel.")

    # --- scalar parameter normalization (same ops as the torch module) ---
    na_p = jax.nn.elu(params["alpha_p"])[0]
    nb_p = jax.nn.elu(params["beta_p"])[0]
    nz_p = jax.nn.sigmoid(params["zeta_p"])[0]
    na_q = jax.nn.elu(params["alpha_q"])[0]
    nb_q = jax.nn.elu(params["beta_q"])[0]
    nz_q = jax.nn.sigmoid(params["zeta_q"])[0]
    coeff_p = _jacobi_recurrence_coeffs(na_p, nb_p, nz_p, degree_p)
    coeff_q = _jacobi_recurrence_coeffs(na_q, nb_q, nz_q, degree_q)
    w_p = params["w_p"].astype(jnp.float32)
    w_q = params["w_q"].astype(jnp.float32)

    # --- layout: flatten row-major, map last dim onto 128 lanes ---
    orig_shape = x.shape
    orig_dtype = x.dtype
    flat = x.reshape(-1)
    n = flat.shape[0]

    # Sublane alignment depends on dtype packing: f32 -> 8 rows, bf16 -> 16, i8 -> 32.
    itemsize = jnp.dtype(orig_dtype).itemsize
    row_align = 8 * max(1, 4 // max(1, itemsize))
    chunk = row_align * LANE
    aligned_n = (n // chunk) * chunk          # kernel handles this prefix
    tail_n = n - aligned_n                    # <= chunk-1 elems, plain-JAX path

    outs = []
    if aligned_n > 0:
        rows = aligned_n // LANE              # multiple of row_align
        x2 = flat[:aligned_n].reshape(rows, LANE)

        # Grid shaping: >= 2 steps when possible (keeps both v7x TCs busy),
        # blocks capped at MAX_BLOCK_ROWS, row-aligned; partial edge block OK.
        num_blocks = max(1, pl.cdiv(rows, MAX_BLOCK_ROWS))
        if rows >= 2 * row_align:
            num_blocks = max(2, num_blocks)
        block_rows = pl.cdiv(pl.cdiv(rows, num_blocks), row_align) * row_align
        grid = pl.cdiv(rows, block_rows)

        n_elems = aligned_n
        cost = pl.CostEstimate(
            flops=n_elems * (12 + 8 * (degree_p + degree_q)),
            transcendentals=n_elems * 5,
            bytes_accessed=2 * n_elems * itemsize
            + 4 * (coeff_p.size + coeff_q.size + w_p.size + w_q.size),
        )

        kernel = functools.partial(pade_rkan_kernel,
                                   degree_p=degree_p, degree_q=degree_q)
        out2 = pl.pallas_call(
            kernel,
            out_shape=jax.ShapeDtypeStruct((rows, LANE), orig_dtype),
            grid_spec=pl.GridSpec(
                grid=(grid,),
                in_specs=[
                    pl.BlockSpec(memory_space=pltpu.MemorySpace.SMEM),  # coeff_p
                    pl.BlockSpec(memory_space=pltpu.MemorySpace.SMEM),  # coeff_q
                    pl.BlockSpec(memory_space=pltpu.MemorySpace.SMEM),  # w_p
                    pl.BlockSpec(memory_space=pltpu.MemorySpace.SMEM),  # w_q
                    pl.BlockSpec((block_rows, LANE), lambda i: (i, 0)),
                ],
                out_specs=pl.BlockSpec((block_rows, LANE), lambda i: (i, 0)),
            ),
            compiler_params=pltpu.CompilerParams(
                dimension_semantics=("parallel",),
                vmem_limit_bytes=VMEM_LIMIT_BYTES,
            ),
            cost_estimate=cost,
        )(coeff_p, coeff_q, w_p, w_q, x2)
        outs.append(out2.reshape(-1))

    if tail_n > 0:
        # Tiny unaligned tail: identical math in plain JAX (fuses under jit).
        outs.append(_pade_rkan_elementwise_jax(
            flat[aligned_n:], coeff_p, coeff_q, w_p, w_q, degree_p, degree_q))

    out_flat = outs[0] if len(outs) == 1 else jnp.concatenate(outs)
    return out_flat.reshape(orig_shape)


# ----------------------------- pure-JAX reference -----------------------------
def _shifted_jacobi_ref(s, deg, alpha, beta, zeta):
    t = 2.0 * s ** zeta - 1.0
    p_nm2 = jnp.ones_like(s)
    p_nm1 = 0.5 * ((alpha - beta) + (alpha + beta + 2.0) * t)
    if deg == 0:
        return p_nm2
    if deg == 1:
        return p_nm1
    for m in range(2, deg + 1):
        mf = float(m)
        c = 2.0 * mf + alpha + beta
        a1 = 2.0 * mf * (mf + alpha + beta) * (c - 2.0)
        a2 = (c - 1.0) * (alpha * alpha - beta * beta)
        a3 = (c - 1.0) * c * (c - 2.0)
        a4 = 2.0 * (mf + alpha - 1.0) * (mf + beta - 1.0) * c
        p_m = ((a2 + a3 * t) * p_nm1 - a4 * p_nm2) / a1
        p_nm2, p_nm1 = p_nm1, p_m
    return p_nm1


def pade_rkan_ref(x, params, degree_p, degree_q):
    na_p = jax.nn.elu(params["alpha_p"])[0]
    nb_p = jax.nn.elu(params["beta_p"])[0]
    nz_p = jax.nn.sigmoid(params["zeta_p"])[0]
    na_q = jax.nn.elu(params["alpha_q"])[0]
    nb_q = jax.nn.elu(params["beta_q"])[0]
    nz_q = jax.nn.sigmoid(params["zeta_q"])[0]
    s = jax.nn.sigmoid(x)
    p = params["w_p"][0] + params["w_p"][1] * s
    for deg in range(2, degree_p):
        p = p + params["w_p"][deg] * _shifted_jacobi_ref(s, deg, na_p, nb_p, nz_p)
    q = params["w_q"][0] + params["w_q"][1] * s
    for deg in range(2, degree_q):
        q = q + params["w_q"][deg] * _shifted_jacobi_ref(s, deg, na_q, nb_q, nz_q)
    return p / q


if __name__ == "__main__":
    degree_p, degree_q = 5, 3

    key = jax.random.PRNGKey(0)
    kx, kwp, kwq, kz = jax.random.split(key, 4)

    # deterministic params: module __init__ values plus small deterministic jitter
    params = {
        "alpha_p": jnp.ones((1,), jnp.float32),
        "beta_p": jnp.ones((1,), jnp.float32),
        "zeta_p": 0.1 * jax.random.normal(kz, (1,), jnp.float32),
        "w_p": jnp.ones((degree_p,), jnp.float32)
        + 0.1 * jax.random.normal(kwp, (degree_p,), jnp.float32),
        "alpha_q": jnp.ones((1,), jnp.float32),
        "beta_q": jnp.ones((1,), jnp.float32),
        "zeta_q": jnp.zeros((1,), jnp.float32),
        "w_q": jnp.ones((degree_q,), jnp.float32)
        + 0.05 * jax.random.normal(kwq, (degree_q,), jnp.float32),
    }

    x = jax.random.normal(kx, (2, 4, 16, 16), jnp.float32)  # NCHW

    out = pade_rkan_forward(x, params, degree_p, degree_q)
    out = jax.block_until_ready(out)

    ref = pade_rkan_ref(x, params, degree_p, degree_q)
    np.testing.assert_allclose(np.asarray(out), np.asarray(ref), rtol=2e-5, atol=2e-5)

    print("KERNEL_OK")
</pallas_src>

<mosaic_0001>
module attributes {stable_mosaic.version = 11 : i64} {
  func.func @pade_rkan_kernel(%arg0: i32, %arg1: memref<12xf32, #tpu.memory_space<smem>>, %arg2: memref<6xf32, #tpu.memory_space<smem>>, %arg3: memref<5xf32, #tpu.memory_space<smem>>, %arg4: memref<3xf32, #tpu.memory_space<smem>>, %arg5: memref<8x128xf32, #tpu.memory_space<vmem>>, %arg6: memref<8x128xf32, #tpu.memory_space<vmem>>) attributes {dimension_semantics = [#tpu.dimension_semantics<parallel>], iteration_bounds = array<i64: 2>, scalar_prefetch = 0 : i64, scratch_operands = 0 : i64, tpu.core_type = #tpu.core_type<tc>, window_params = [{transform_indices = @transform_0, window_bounds = array<i64: 12>}, {transform_indices = @transform_1, window_bounds = array<i64: 6>}, {transform_indices = @transform_2, window_bounds = array<i64: 5>}, {transform_indices = @transform_3, window_bounds = array<i64: 3>}, {transform_indices = @transform_4, window_bounds = array<i64: 8, 128>}, {transform_indices = @transform_5, window_bounds = array<i64: 8, 128>}]} {
    %c0 = arith.constant 0 : index
    %c0_0 = arith.constant 0 : index
    %0 = vector.load %arg5[%c0, %c0_0] : memref<8x128xf32, #tpu.memory_space<vmem>>, vector<8x128xf32>
    %1 = math.absf %0 : vector<8x128xf32>
    %cst = arith.constant 0.000000e+00 : f32
    %2 = vector.broadcast %cst : f32 to vector<8x128xf32>
    %3 = arith.subf %2, %1 : vector<8x128xf32>
    %4 = math.exp %3 : vector<8x128xf32>
    %cst_1 = arith.constant 1.000000e+00 : f32
    %5 = vector.broadcast %cst_1 : f32 to vector<8x128xf32>
    %6 = arith.addf %5, %4 : vector<8x128xf32>
    %cst_2 = arith.constant 0.000000e+00 : f32
    %7 = vector.broadcast %cst_2 : f32 to vector<8x128xf32>
    %8 = arith.cmpf oge, %0, %7 : vector<8x128xf32>
    %cst_3 = arith.constant 1.000000e+00 : f32
    %9 = vector.broadcast %cst_3 : f32 to vector<8x128xf32>
    %10 = arith.select %8, %9, %4 : vector<8x128xi1>, vector<8x128xf32>
    %11 = arith.divf %10, %6 : vector<8x128xf32>
    %cst_4 = arith.constant 0.000000e+00 : f32
    %12 = vector.broadcast %cst_4 : f32 to vector<8x128xf32>
    %13 = arith.minimumf %0, %12 : vector<8x128xf32>
    %14 = math.log %6 : vector<8x128xf32>
    %15 = arith.subf %13, %14 : vector<8x128xf32>
    %c0_5 = arith.constant 0 : index
    %16 = memref.load %arg3[%c0_5] : memref<5xf32, #tpu.memory_space<smem>>
    %c1 = arith.constant 1 : index
    %17 = memref.load %arg3[%c1] : memref<5xf32, #tpu.memory_space<smem>>
    %18 = vector.broadcast %17 : f32 to vector<8x128xf32>
    %19 = arith.mulf %18, %11 : vector<8x128xf32>
    %20 = vector.broadcast %16 : f32 to vector<8x128xf32>
    %21 = arith.addf %20, %19 : vector<8x128xf32>
    %c0_6 = arith.constant 0 : index
    %22 = memref.load %arg1[%c0_6] : memref<12xf32, #tpu.memory_space<smem>>
    %23 = vector.broadcast %22 : f32 to vector<8x128xf32>
    %24 = arith.mulf %23, %15 : vector<8x128xf32>
    %25 = math.exp %24 : vector<8x128xf32>
    %cst_7 = arith.constant 2.000000e+00 : f32
    %26 = vector.broadcast %cst_7 : f32 to vector<8x128xf32>
    %27 = arith.mulf %26, %25 : vector<8x128xf32>
    %cst_8 = arith.constant 1.000000e+00 : f32
    %28 = vector.broadcast %cst_8 : f32 to vector<8x128xf32>
    %29 = arith.subf %27, %28 : vector<8x128xf32>
    %cst_9 = arith.constant 1.000000e+00 : f32
    %30 = vector.broadcast %cst_9 : f32 to vector<8x128xf32>
    %c1_10 = arith.constant 1 : index
    %31 = memref.load %arg1[%c1_10] : memref<12xf32, #tpu.memory_space<smem>>
    %c2 = arith.constant 2 : index
    %32 = memref.load %arg1[%c2] : memref<12xf32, #tpu.memory_space<smem>>
    %33 = vector.broadcast %32 : f32 to vector<8x128xf32>
    %34 = arith.mulf %33, %29 : vector<8x128xf32>
    %35 = vector.broadcast %31 : f32 to vector<8x128xf32>
    %36 = arith.addf %35, %34 : vector<8x128xf32>
    %c3 = arith.constant 3 : index
    %37 = memref.load %arg1[%c3] : memref<12xf32, #tpu.memory_space<smem>>
    %c4 = arith.constant 4 : index
    %38 = memref.load %arg1[%c4] : memref<12xf32, #tpu.memory_space<smem>>
    %c5 = arith.constant 5 : index
    %39 = memref.load %arg1[%c5] : memref<12xf32, #tpu.memory_space<smem>>
    %40 = vector.broadcast %38 : f32 to vector<8x128xf32>
    %41 = arith.mulf %40, %29 : vector<8x128xf32>
    %42 = vector.broadcast %37 : f32 to vector<8x128xf32>
    %43 = arith.addf %42, %41 : vector<8x128xf32>
    %44 = arith.mulf %43, %36 : vector<8x128xf32>
    %45 = vector.broadcast %39 : f32 to vector<8x128xf32>
    %46 = arith.mulf %45, %30 : vector<8x128xf32>
    %47 = arith.subf %44, %46 : vector<8x128xf32>
    %c2_11 = arith.constant 2 : index
    %48 = memref.load %arg3[%c2_11] : memref<5xf32, #tpu.memory_space<smem>>
    %49 = vector.broadcast %48 : f32 to vector<8x128xf32>
    %50 = arith.mulf %49, %47 : vector<8x128xf32>
    %51 = arith.addf %21, %50 : vector<8x128xf32>
    %c6 = arith.constant 6 : index
    %52 = memref.load %arg1[%c6] : memref<12xf32, #tpu.memory_space<smem>>
    %c7 = arith.constant 7 : index
    %53 = memref.load %arg1[%c7] : memref<12xf32, #tpu.memory_space<smem>>
    %c8 = arith.constant 8 : index
    %54 = memref.load %arg1[%c8] : memref<12xf32, #tpu.memory_space<smem>>
    %55 = vector.broadcast %53 : f32 to vector<8x128xf32>
    %56 = arith.mulf %55, %29 : vector<8x128xf32>
    %57 = vector.broadcast %52 : f32 to vector<8x128xf32>
    %58 = arith.addf %57, %56 : vector<8x128xf32>
    %59 = arith.mulf %58, %47 : vector<8x128xf32>
    %60 = vector.broadcast %54 : f32 to vector<8x128xf32>
    %61 = arith.mulf %60, %36 : vector<8x128xf32>
    %62 = arith.subf %59, %61 : vector<8x128xf32>
    %c3_12 = arith.constant 3 : index
    %63 = memref.load %arg3[%c3_12] : memref<5xf32, #tpu.memory_space<smem>>
    %64 = vector.broadcast %63 : f32 to vector<8x128xf32>
    %65 = arith.mulf %64, %62 : vector<8x128xf32>
    %66 = arith.addf %51, %65 : vector<8x128xf32>
    %c9 = arith.constant 9 : index
    %67 = memref.load %arg1[%c9] : memref<12xf32, #tpu.memory_space<smem>>
    %c10 = arith.constant 10 : index
    %68 = memref.load %arg1[%c10] : memref<12xf32, #tpu.memory_space<smem>>
    %c11 = arith.constant 11 : index
    %69 = memref.load %arg1[%c11] : memref<12xf32, #tpu.memory_space<smem>>
    %70 = vector.broadcast %68 : f32 to vector<8x128xf32>
    %71 = arith.mulf %70, %29 : vector<8x128xf32>
    %72 = vector.broadcast %67 : f32 to vector<8x128xf32>
    %73 = arith.addf %72, %71 : vector<8x128xf32>
    %74 = arith.mulf %73, %62 : vector<8x128xf32>
    %75 = vector.broadcast %69 : f32 to vector<8x128xf32>
    %76 = arith.mulf %75, %47 : vector<8x128xf32>
    %77 = arith.subf %74, %76 : vector<8x128xf32>
    %c4_13 = arith.constant 4 : index
    %78 = memref.load %arg3[%c4_13] : memref<5xf32, #tpu.memory_space<smem>>
    %79 = vector.broadcast %78 : f32 to vector<8x128xf32>
    %80 = arith.mulf %79, %77 : vector<8x128xf32>
    %81 = arith.addf %66, %80 : vector<8x128xf32>
    %c0_14 = arith.constant 0 : index
    %82 = memref.load %arg4[%c0_14] : memref<3xf32, #tpu.memory_space<smem>>
    %c1_15 = arith.constant 1 : index
    %83 = memref.load %arg4[%c1_15] : memref<3xf32, #tpu.memory_space<smem>>
    %84 = vector.broadcast %83 : f32 to vector<8x128xf32>
    %85 = arith.mulf %84, %11 : vector<8x128xf32>
    %86 = vector.broadcast %82 : f32 to vector<8x128xf32>
    %87 = arith.addf %86, %85 : vector<8x128xf32>
    %c0_16 = arith.constant 0 : index
    %88 = memref.load %arg2[%c0_16] : memref<6xf32, #tpu.memory_space<smem>>
    %89 = vector.broadcast %88 : f32 to vector<8x128xf32>
    %90 = arith.mulf %89, %15 : vector<8x128xf32>
    %91 = math.exp %90 : vector<8x128xf32>
    %cst_17 = arith.constant 2.000000e+00 : f32
    %92 = vector.broadcast %cst_17 : f32 to vector<8x128xf32>
    %93 = arith.mulf %92, %91 : vector<8x128xf32>
    %cst_18 = arith.constant 1.000000e+00 : f32
    %94 = vector.broadcast %cst_18 : f32 to vector<8x128xf32>
    %95 = arith.subf %93, %94 : vector<8x128xf32>
    %cst_19 = arith.constant 1.000000e+00 : f32
    %96 = vector.broadcast %cst_19 : f32 to vector<8x128xf32>
    %c1_20 = arith.constant 1 : index
    %97 = memref.load %arg2[%c1_20] : memref<6xf32, #tpu.memory_space<smem>>
    %c2_21 = arith.constant 2 : index
    %98 = memref.load %arg2[%c2_21] : memref<6xf32, #tpu.memory_space<smem>>
    %99 = vector.broadcast %98 : f32 to vector<8x128xf32>
    %100 = arith.mulf %99, %95 : vector<8x128xf32>
    %101 = vector.broadcast %97 : f32 to vector<8x128xf32>
    %102 = arith.addf %101, %100 : vector<8x128xf32>
    %c3_22 = arith.constant 3 : index
    %103 = memref.load %arg2[%c3_22] : memref<6xf32, #tpu.memory_space<smem>>
    %c4_23 = arith.constant 4 : index
    %104 = memref.load %arg2[%c4_23] : memref<6xf32, #tpu.memory_space<smem>>
    %c5_24 = arith.constant 5 : index
    %105 = memref.load %arg2[%c5_24] : memref<6xf32, #tpu.memory_space<smem>>
    %106 = vector.broadcast %104 : f32 to vector<8x128xf32>
    %107 = arith.mulf %106, %95 : vector<8x128xf32>
    %108 = vector.broadcast %103 : f32 to vector<8x128xf32>
    %109 = arith.addf %108, %107 : vector<8x128xf32>
    %110 = arith.mulf %109, %102 : vector<8x128xf32>
    %111 = vector.broadcast %105 : f32 to vector<8x128xf32>
    %112 = arith.mulf %111, %96 : vector<8x128xf32>
    %113 = arith.subf %110, %112 : vector<8x128xf32>
    %c2_25 = arith.constant 2 : index
    %114 = memref.load %arg4[%c2_25] : memref<3xf32, #tpu.memory_space<smem>>
    %115 = vector.broadcast %114 : f32 to vector<8x128xf32>
    %116 = arith.mulf %115, %113 : vector<8x128xf32>
    %117 = arith.addf %87, %116 : vector<8x128xf32>
    %118 = arith.divf %81, %117 : vector<8x128xf32>
    %c0_26 = arith.constant 0 : index
    %c0_27 = arith.constant 0 : index
    %119 = vector.load %arg6[%c0_26, %c0_27] : memref<8x128xf32, #tpu.memory_space<vmem>>, vector<8x128xf32>
    tpu.vector_store %arg6[%c0_26, %c0_27], %118 {strides = array<i32>} : memref<8x128xf32, #tpu.memory_space<vmem>>, vector<8x128xf32>,
    return
  }
  func.func @transform_0(%arg0: i32) -> i32 {
    %c0_i32 = arith.constant 0 : i32
    %c0_i32_0 = arith.constant 0 : i32
    return %c0_i32 : i32
  }
  func.func @transform_1(%arg0: i32) -> i32 {
    %c0_i32 = arith.constant 0 : i32
    %c0_i32_0 = arith.constant 0 : i32
    return %c0_i32 : i32
  }
  func.func @transform_2(%arg0: i32) -> i32 {
    %c0_i32 = arith.constant 0 : i32
    %c0_i32_0 = arith.constant 0 : i32
    return %c0_i32 : i32
  }
  func.func @transform_3(%arg0: i32) -> i32 {
    %c0_i32 = arith.constant 0 : i32
    %c0_i32_0 = arith.constant 0 : i32
    return %c0_i32 : i32
  }
  func.func @transform_4(%arg0: i32) -> (i32, i32) {
    %c0_i32 = arith.constant 0 : i32
    %c0_i32_0 = arith.constant 0 : i32
    return %arg0, %c0_i32 : i32, i32
  }
  func.func @transform_5(%arg0: i32) -> (i32, i32) {
    %c0_i32 = arith.constant 0 : i32
    %c0_i32_0 = arith.constant 0 : i32
    return %arg0, %c0_i32 : i32, i32
  }
}

</mosaic_0001>

<llo_original>
// kernel: pade_rkan_forward.1
$region0: #{pade_rkan_forward.1}
  #allocation0 [shape = 'u32[]', space=smem, size = 0x4, offset = 0x4, fixed_abs, tag = 'smem constant byte address 0x4 - core index']
  #allocation1 [shape = 'u32[72,128]{1,0:T(1,128)}', space=vmem, size = 0x9000, scoped, tag = 'internal scratch']
  %s0 = inlined_call_operand.vmem [shape: f32[12], index: 0, kind: input, shape index: {}]
  %s1 = inlined_call_operand.vmem [shape: f32[6], index: 1, kind: input, shape index: {}]
  %s2 = inlined_call_operand.vmem [shape: f32[5], index: 2, kind: input, shape index: {}]
  %s3 = inlined_call_operand.vmem [shape: f32[3], index: 3, kind: input, shape index: {}]
  %s4 = inlined_call_operand.vmem [shape: f32[16,128], index: 4, kind: input, shape index: {}]
  %s5 = inlined_call_operand.vmem [shape: f32[16,128], index: 5, kind: output, shape index: {}]
  %s6 = sld [smem:[#allocation0]]
  $region69: #{pade_rkan_forward.1} parent=0
    _
  %s8 = ssub.s32 1, %s6
  %s9 = scalar_select 0, %s8, %s6
  $region1: #{pade_rkan_forward.1} parent=0
    #allocation2 [shape = 'u8[512]{0}', space=smem, size = 0x200, scoped, tag = 'input window, operand 0, single buffered']
    #allocation3 [shape = 's32[2]{0}', space=sflag, size = 0x8, scoped, tag = 'scoped memory for pade_rkan_forward.1']
    #allocation4 [shape = 'u8[512]{0}', space=smem, size = 0x200, scoped, tag = 'input window, operand 1, single buffered']
    #allocation5 [shape = 's32[1]{0}', space=sflag, size = 0x4, scoped, tag = 'scoped memory for pade_rkan_forward.1']
    #allocation6 [shape = 'u8[512]{0}', space=smem, size = 0x200, scoped, tag = 'input window, operand 2, single buffered']
    #allocation7 [shape = 'u8[512]{0}', space=smem, size = 0x200, scoped, tag = 'input window, operand 3, single buffered']
    #allocation8 [shape = 's32[1]{0}', space=sflag, size = 0x4, scoped, tag = 'scoped memory for pade_rkan_forward.1']
    %10 = vsyncpa [#allocation3], 0
    %11 = vsyncpa [#allocation5], 0
    %12 = vsyncpa [#allocation8], 0
    loop: start=0, step=1, limit=4
    $region2: #{pade_rkan_forward.1} parent=1 // loop_pre_header
      _
    $region3: #{pade_rkan_forward.1} parent=1 // loop_header
      %s14 = sphi 0, %s18
      %p15 = scmp.ge.s32.totalorder %s14, 4
      %s22 = sphi 0, %s22
      %s24 = sphi 0, %s22
      %s25 = sphi 0, %s24
      %s39 = sphi 0, %s25
      %s43 = sphi 0, %s43
      %s45 = sphi 0, %s43
      %s46 = sphi 0, %s45
      %s60 = sphi 0, %s46
      %s64 = sphi 0, %s64
      %s66 = sphi 0, %s64
      %s67 = sphi 0, %s66
      %s81 = sphi 0, %s67
      %s85 = sphi 0, %s85
      %s87 = sphi 0, %s85
      %s88 = sphi 0, %s87
      %s102 = sphi 0, %s88
      %s108 = sphi 0, %s110
      %s111 = sphi 0, %s108
      %s112 = sphi 0, %s111
      %s128 = sphi 0, %s112
      %s134 = sphi 0, %s136
      %s137 = sphi 0, %s134
      %s138 = sphi 0, %s137
      %s154 = sphi 0, %s138
    $region4: #{pade_rkan_forward.1} parent=1 // loop_header_branch
      %17 = sbr.rel (%p15) target = $region8
    $region5: #{pade_rkan_forward.1} parent=1 // loop_body
      %s19 = ssub.s32 %s14, 1
      %s20 = ssub.s32 %s14, 2
      %s21 = sadd.s32 %s14, 1
      %s23 = sadd.s32 %s22, 1
      %p26 = scmp.eq.s32.totalorder %s14, 1
      %p27 = scmp.ne.s32.totalorder %s22, %s24
      %p28 = scmp.eq.s32.totalorder %s14, 0
      %p29 = por %p27, %p28
      %p30 = scmp.ne.s32.totalorder %s22, %s24
      %p31 = scmp.eq.s32.totalorder %s19, 1
      %p32 = por %p30, %p31
      %p33 = scmp.ne.s32.totalorder %s24, %s25
      %p34 = scmp.eq.s32.totalorder %s19, 0
      %p35 = por %p33, %p34
      %p36 = scmp.ne.s32.totalorder %s24, %s25
      %p37 = scmp.eq.s32.totalorder %s20, 1
      %p38 = por %p36, %p37
      %p40 = scmp.ne.s32.totalorder %s25, %s39
      %p41 = scmp.eq.s32.totalorder %s20, 0
      %p42 = por %p40, %p41
      %s44 = sadd.s32 %s43, 1
      %p47 = scmp.eq.s32.totalorder %s14, 1
      %p48 = scmp.ne.s32.totalorder %s43, %s45
      %p49 = scmp.eq.s32.totalorder %s14, 0
      %p50 = por %p48, %p49
      %p51 = scmp.ne.s32.totalorder %s43, %s45
      %p52 = scmp.eq.s32.totalorder %s19, 1
      %p53 = por %p51, %p52
      %p54 = scmp.ne.s32.totalorder %s45, %s46
      %p55 = scmp.eq.s32.totalorder %s19, 0
      %p56 = por %p54, %p55
      %p57 = scmp.ne.s32.totalorder %s45, %s46
      %p58 = scmp.eq.s32.totalorder %s20, 1
      %p59 = por %p57, %p58
      %p61 = scmp.ne.s32.totalorder %s46, %s60
      %p62 = scmp.eq.s32.totalorder %s20, 0
      %p63 = por %p61, %p62
      %s65 = sadd.s32 %s64, 1
      %p68 = scmp.eq.s32.totalorder %s14, 1
      %p69 = scmp.ne.s32.totalorder %s64, %s66
      %p70 = scmp.eq.s32.totalorder %s14, 0
      %p71 = por %p69, %p70
      %p72 = scmp.ne.s32.totalorder %s64, %s66
      %p73 = scmp.eq.s32.totalorder %s19, 1
      %p74 = por %p72, %p73
      %p75 = scmp.ne.s32.totalorder %s66, %s67
      %p76 = scmp.eq.s32.totalorder %s19, 0
      %p77 = por %p75, %p76
      %p78 = scmp.ne.s32.totalorder %s66, %s67
      %p79 = scmp.eq.s32.totalorder %s20, 1
      %p80 = por %p78, %p79
      %p82 = scmp.ne.s32.totalorder %s67, %s81
      %p83 = scmp.eq.s32.totalorder %s20, 0
      %p84 = por %p82, %p83
      %s86 = sadd.s32 %s85, 1
      %p89 = scmp.eq.s32.totalorder %s14, 1
      %p90 = scmp.ne.s32.totalorder %s85, %s87
      %p91 = scmp.eq.s32.totalorder %s14, 0
      %p92 = por %p90, %p91
      %p93 = scmp.ne.s32.totalorder %s85, %s87
      %p94 = scmp.eq.s32.totalorder %s19, 1
      %p95 = por %p93, %p94
      %p96 = scmp.ne.s32.totalorder %s87, %s88
      %p97 = scmp.eq.s32.totalorder %s19, 0
      %p98 = por %p96, %p97
      %p99 = scmp.ne.s32.totalorder %s87, %s88
      %p100 = scmp.eq.s32.totalorder %s20, 1
      %p101 = por %p99, %p100
      %p103 = scmp.ne.s32.totalorder %s88, %s102
      %p104 = scmp.eq.s32.totalorder %s20, 0
      %p105 = por %p103, %p104
      %s106 = ssub.s32 %s14, %s21
      %p107 = scmp.eq.s32.totalorder %s106, 0
      %s109 = sadd.s32 %s108, 1
      %s110 = scalar_select %p107, %s108, %s109
      %p113 = pneg %p107
      %p114 = scmp.eq.s32.totalorder %s14, 1
      %p115 = por %p113, %p114
      %p116 = scmp.ne.s32.totalorder %s108, %s111
      %p117 = scmp.eq.s32.totalorder %s14, 0
      %p118 = por %p116, %p117
      %p119 = scmp.ne.s32.totalorder %s108, %s111
      %p120 = scmp.eq.s32.totalorder %s19, 1
      %p121 = por %p119, %p120
      %p122 = scmp.ne.s32.totalorder %s111, %s112
      %p123 = scmp.eq.s32.totalorder %s19, 0
      %p124 = por %p122, %p123
      %p125 = scmp.ne.s32.totalorder %s111, %s112
      %p126 = scmp.eq.s32.totalorder %s20, 1
      %p127 = por %p125, %p126
      %p129 = scmp.ne.s32.totalorder %s112, %s128
      %p130 = scmp.eq.s32.totalorder %s20, 0
      %p131 = por %p129, %p130
      %s132 = ssub.s32 %s14, %s21
      %p133 = scmp.eq.s32.totalorder %s132, 0
      %s135 = sadd.s32 %s134, 1
      %s136 = scalar_select %p133, %s134, %s135
      %p139 = pneg %p133
      %p140 = scmp.eq.s32.totalorder %s14, 1
      %p141 = por %p139, %p140
      %p142 = scmp.ne.s32.totalorder %s134, %s137
      %p143 = scmp.eq.s32.totalorder %s14, 0
      %p144 = por %p142, %p143
      %p145 = scmp.ne.s32.totalorder %s134, %s137
      %p146 = scmp.eq.s32.totalorder %s19, 1
      %p147 = por %p145, %p146
      %p148 = scmp.ne.s32.totalorder %s137, %s138
      %p149 = scmp.eq.s32.totalorder %s19, 0
      %p150 = por %p148, %p149
      %p151 = scmp.ne.s32.totalorder %s137, %s138
      %p152 = scmp.eq.s32.totalorder %s20, 1
      %p153 = por %p151, %p152
      %p155 = scmp.ne.s32.totalorder %s138, %s154
      %p156 = scmp.eq.s32.totalorder %s20, 0
      %p157 = por %p155, %p156
      %p158 = scmp.le.s32.totalorder 1, %s14
      %p159 = scmp.lt.s32.totalorder %s14, 3
      %p160 = pnand %p158, %p159
      %p161 = pneg %p160
      // Predicated region
      $region9: #{pade_rkan_forward.1} parent=5 // pred_check
        _
      $region10: #{pade_rkan_forward.1} parent=5 // pred_check_branch
        %163 = sbr.rel (%p160) target = $region12
      $region11: #{pade_rkan_forward.1} parent=5 // pred_region
        %s164 = ssub.s32 %s14, 1
        // Predicated region
        $region13: #{pade_rkan_forward.1} parent=11 // pred_check
          %p165 = pneg %p35
        $region14: #{pade_rkan_forward.1} parent=11 // pred_check_branch
          %167 = sbr.rel (%p165) target = $region16
        $region15: #{pade_rkan_forward.1} parent=11 // pred_region
          %169 = vsyncadd [#allocation3], 0
          %s171 = sshll.u32 %s0, 4
          %s172 = int_to_ptr.vmem [resolvable:$true] %s171
          %174 = dma.vmem_to_smem %s172, 16, [#allocation2], [#allocation3]
        $region16: #{pade_rkan_forward.1} parent=11 // pred_fallthru
          _
        // Predicated region
        $region17: #{pade_rkan_forward.1} parent=11 // pred_check
          %p175 = pneg %p56
        $region18: #{pade_rkan_forward.1} parent=11 // pred_check_branch
          %177 = sbr.rel (%p175) target = $region20
        $region19: #{pade_rkan_forward.1} parent=11 // pred_region
          %179 = vsyncadd [#allocation5], 0
          %s181 = sshll.u32 %s1, 4
          %s182 = int_to_ptr.vmem [resolvable:$true] %s181
          %184 = dma.vmem_to_smem %s182, 16, [#allocation4], [#allocation5]
        $region20: #{pade_rkan_forward.1} parent=11 // pred_fallthru
          _
        // Predicated region
        $region21: #{pade_rkan_forward.1} parent=11 // pred_check
          %p185 = pneg %p77
        $region22: #{pade_rkan_forward.1} parent=11 // pred_check_branch
          %187 = sbr.rel (%p185) target = $region24
        $region23: #{pade_rkan_forward.1} parent=11 // pred_region
          %189 = vsyncadd [#allocation5], 0
          %s191 = sshll.u32 %s2, 4
          %s192 = int_to_ptr.vmem [resolvable:$true] %s191
          %194 = dma.vmem_to_smem %s192, 16, [#allocation6], [#allocation5]
        $region24: #{pade_rkan_forward.1} parent=11 // pred_fallthru
          _
        // Predicated region
        $region25: #{pade_rkan_forward.1} parent=11 // pred_check
          %p195 = pneg %p98
        $region26: #{pade_rkan_forward.1} parent=11 // pred_check_branch
          %197 = sbr.rel (%p195) target = $region28
        $region27: #{pade_rkan_forward.1} parent=11 // pred_region
          %199 = vsyncadd [#allocation8], 0
          %s201 = sshll.u32 %s3, 4
          %s202 = int_to_ptr.vmem [resolvable:$true] %s201
          %204 = dma.vmem_to_smem %s202, 16, [#allocation7], [#allocation8]
        $region28: #{pade_rkan_forward.1} parent=11 // pred_fallthru
          _
      $region12: #{pade_rkan_forward.1} parent=5 // pred_fallthru
        _
      %p205 = scmp.lt.s32.totalorder %s14, 2
      // Predicated region
      $region29: #{pade_rkan_forward.1} parent=5 // pred_check
        %p206 = pneg %p205
      $region30: #{pade_rkan_forward.1} parent=5 // pred_check_branch
        %208 = sbr.rel (%p206) target = $region32
      $region31: #{pade_rkan_forward.1} parent=5 // pred_region
        // Predicated region
        $region33: #{pade_rkan_forward.1} parent=31 // pred_check
          %p209 = pneg %p118
        $region34: #{pade_rkan_forward.1} parent=31 // pred_check_branch
          %211 = sbr.rel (%p209) target = $region36
        $region35: #{pade_rkan_forward.1} parent=31 // pred_region
          %p212 = scmp.lt.s32.totalorder %s14, 1
          %s213 = scalar_select %p212, %s14, 1
          %s214 = smul.addr %s213, 8
          %s215 = scalar_lea.vmem %s4, %s214
        $region36: #{pade_rkan_forward.1} parent=31 // pred_fallthru
          _
      $region32: #{pade_rkan_forward.1} parent=5 // pred_fallthru
        _
      %p216 = scmp.le.s32.totalorder 1, %s14
      %p217 = scmp.lt.s32.totalorder %s14, 3
      %p218 = pnand %p216, %p217
      %p219 = pneg %p218
      // Predicated region
      $region37: #{pade_rkan_forward.1} parent=5 // pred_check
        _
      $region38: #{pade_rkan_forward.1} parent=5 // pred_check_branch
        %221 = sbr.rel (%p218) target = $region40
      $region39: #{pade_rkan_forward.1} parent=5 // pred_region
        %s222 = ssub.s32 %s14, 1
        // Predicated region
        $region41: #{pade_rkan_forward.1} parent=39 // pred_check
          %p223 = pneg %p35
        $region42: #{pade_rkan_forward.1} parent=39 // pred_check_branch
          %225 = sbr.rel (%p223) target = $region44
        $region43: #{pade_rkan_forward.1} parent=39 // pred_region
          %227 = dma.done [#allocation3], 16
        $region44: #{pade_rkan_forward.1} parent=39 // pred_fallthru
          _
        // Predicated region
        $region45: #{pade_rkan_forward.1} parent=39 // pred_check
          %p228 = pneg %p56
        $region46: #{pade_rkan_forward.1} parent=39 // pred_check_branch
          %230 = sbr.rel (%p228) target = $region48
        $region47: #{pade_rkan_forward.1} parent=39 // pred_region
          %232 = dma.done [#allocation5], 16
        $region48: #{pade_rkan_forward.1} parent=39 // pred_fallthru
          _
        // Predicated region
        $region49: #{pade_rkan_forward.1} parent=39 // pred_check
          %p233 = pneg %p77
        $region50: #{pade_rkan_forward.1} parent=39 // pred_check_branch
          %235 = sbr.rel (%p233) target = $region52
        $region51: #{pade_rkan_forward.1} parent=39 // pred_region
          %237 = dma.done [#allocation5], 16
        $region52: #{pade_rkan_forward.1} parent=39 // pred_fallthru
          _
        // Predicated region
        $region53: #{pade_rkan_forward.1} parent=39 // pred_check
          %p238 = pneg %p98
        $region54: #{pade_rkan_forward.1} parent=39 // pred_check_branch
          %240 = sbr.rel (%p238) target = $region56
        $region55: #{pade_rkan_forward.1} parent=39 // pred_region
          %242 = dma.done [#allocation8], 16
        $region56: #{pade_rkan_forward.1} parent=39 // pred_fallthru
          _
        %243 = sfence
        %p244 = pneg %p35
        %p245 = pneg %p32
        %p246 = pneg %p56
        %p247 = pneg %p53
        %p248 = pneg %p77
        %p249 = pneg %p74
        %p250 = pneg %p98
        %p251 = pneg %p95
        %p252 = scmp.lt.s32.totalorder %s19, 1
        %s253 = scalar_select %p252, %s19, 1
        %s254 = smul.addr %s253, 8
        %s255 = scalar_lea.vmem %s4, %s254
        %p256 = pneg %p124
        %p257 = pneg %p121
        %p258 = pneg %p150
        %p259 = pneg %p147
        %p260 = scmp.lt.s32.totalorder %s19, 1
        %s261 = scalar_select %p260, %s19, 1
        %s262 = smul.addr %s261, 8
        %s263 = scalar_lea.vmem %s5, %s262
        %p264 = scmp.lt.s32.totalorder %s19, 1
        %s265 = scalar_select %p264, %s19, 1
        %s266 = smul.addr %s265, 8
        %s267 = scalar_lea.vmem %s4, %s266
        %p268 = scmp.lt.s32.totalorder %s19, 1
        %s269 = scalar_select %p268, %s19, 1
        %s270 = smul.addr %s269, 8
        %s271 = scalar_lea.vmem %s5, %s270
        %v272 = vld [vmem:[%s267] sm:$0xff]
        %v273 = vand.u32 2147483647, %v272
        %v274 = vsub.f32 0.0, %v273
        %v275 = vmul.f32 %v274, 1.442695
        %v276 = vpow.pop %v275
        %v277 = vadd.f32 %v276, 1.0
        %vm278 = vcmp.ge.f32.partialorder %v272, 0.0
        %v279 = vsel %vm278, 1.0, %v276
        %v280 = vrcp.pop %v277
        %v281 = vmul.f32 %v277, %v280
        %v282 = vsub.f32 1.0, %v281
        %v283 = vmul.f32 %v280, %v282
        %v284 = vadd.f32 %v280, %v283
        %vm285 = vweird.f32 %v277
        %vm286 = vweird.f32 %v280
        %vm287 = vmor %vm285, %vm286
        %v288 = vsel %vm287, %v280, %v284
        %v289 = vand.u32 2147483647, %v277
        %vm290 = vcmp.eq.f32.partialorder %v289, 8.507059e+37
        %v291 = vand.u32 %v277, 2147483648
        %v292 = vor.u32 1.1754944e-38, %v291
        %v293 = vsel %vm290, %v292, %v288
        %v294 = vmul.f32 %v279, %v293
        %v295 = vmin.f32 %v272, 0.0
        %v296 = vlog2.pop %v277
        %v297 = vmul.f32 %v296, 0.6931472
        %v298 = vsub.f32 %v295, %v297
        %s299 = sld [smem:[#allocation6]]
        %s300 = sld [smem:[#allocation6 + $0x1]]
        %v301 = vstv %s300
        %v302 = vmul.f32 %v301, %v294
        %v303 = vstv %s299
        %v304 = vadd.f32 %v303, %v302
        %s305 = sld [smem:[#allocation2]]
        %v306 = vstv %s305
        %v307 = vmul.f32 %v306, %v298
        %v308 = vmul.f32 %v307, 1.442695
        %v309 = vpow.pop %v308
        %v310 = vmul.f32 %v309, 2.0
        %v311 = vsub.f32 %v310, 1.0
        %s312 = sld [smem:[#allocation2 + $0x1]]
        %s313 = sld [smem:[#allocation2 + $0x2]]
        %v314 = vstv %s313
        %v315 = vmul.f32 %v314, %v311
        %v316 = vstv %s312
        %v317 = vadd.f32 %v316, %v315
        %s318 = sld [smem:[#allocation2 + $0x3]]
        %s319 = sld [smem:[#allocation2 + $0x4]]
        %s320 = sld [smem:[#allocation2 + $0x5]]
        %v321 = vstv %s319
        %v322 = vmul.f32 %v321, %v311
        %v323 = vstv %s318
        %v324 = vadd.f32 %v323, %v322
        %v325 = vmul.f32 %v324, %v317
        %v326 = vstv %s320
        %v327 = vsub.f32 %v325, %v326
        %s328 = sld [smem:[#allocation6 + $0x2]]
        %v329 = vstv %s328
        %v330 = vmul.f32 %v329, %v327
        %v331 = vadd.f32 %v304, %v330
        %s332 = sld [smem:[#allocation2 + $0x6]]
        %s333 = sld [smem:[#allocation2 + $0x7]]
        %s334 = sld [smem:[#allocation2 + $0x8]]
        %v335 = vstv %s333
        %v336 = vmul.f32 %v335, %v311
        %v337 = vstv %s332
        %v338 = vadd.f32 %v337, %v336
        %v339 = vmul.f32 %v338, %v327
        %v340 = vstv %s334
        %v341 = vmul.f32 %v340, %v317
        %v342 = vsub.f32 %v339, %v341
        %s343 = sld [smem:[#allocation6 + $0x3]]
        %v344 = vstv %s343
        %v345 = vmul.f32 %v344, %v342
        %v346 = vadd.f32 %v331, %v345
        %s347 = sld [smem:[#allocation2 + $0x9]]
        %s348 = sld [smem:[#allocation2 + $0xa]]
        %s349 = sld [smem:[#allocation2 + $0xb]]
        %v350 = vstv %s348
        %v351 = vmul.f32 %v350, %v311
        %v352 = vstv %s347
        %v353 = vadd.f32 %v352, %v351
        %v354 = vmul.f32 %v353, %v342
        %v355 = vstv %s349
        %v356 = vmul.f32 %v355, %v327
        %v357 = vsub.f32 %v354, %v356
        %s358 = sld [smem:[#allocation6 + $0x4]]
        %v359 = vstv %s358
        %v360 = vmul.f32 %v359, %v357
        %v361 = vadd.f32 %v346, %v360
        %s362 = sld [smem:[#allocation7]]
        %s363 = sld [smem:[#allocation7 + $0x1]]
        %v364 = vstv %s363
        %v365 = vmul.f32 %v364, %v294
        %v366 = vstv %s362
        %v367 = vadd.f32 %v366, %v365
        %s368 = sld [smem:[#allocation4]]
        %v369 = vstv %s368
        %v370 = vmul.f32 %v369, %v298
        %v371 = vmul.f32 %v370, 1.442695
        %v372 = vpow.pop %v371
        %v373 = vmul.f32 %v372, 2.0
        %v374 = vsub.f32 %v373, 1.0
        %s375 = sld [smem:[#allocation4 + $0x1]]
        %s376 = sld [smem:[#allocation4 + $0x2]]
        %v377 = vstv %s376
        %v378 = vmul.f32 %v377, %v374
        %v379 = vstv %s375
        %v380 = vadd.f32 %v379, %v378
        %s381 = sld [smem:[#allocation4 + $0x3]]
        %s382 = sld [smem:[#allocation4 + $0x4]]
        %s383 = sld [smem:[#allocation4 + $0x5]]
        %v384 = vstv %s382
        %v385 = vmul.f32 %v384, %v374
        %v386 = vstv %s381
        %v387 = vadd.f32 %v386, %v385
        %v388 = vmul.f32 %v387, %v380
        %v389 = vstv %s383
        %v390 = vsub.f32 %v388, %v389
        %s391 = sld [smem:[#allocation7 + $0x2]]
        %v392 = vstv %s391
        %v393 = vmul.f32 %v392, %v390
        %v394 = vadd.f32 %v367, %v393
        %v395 = vrcp.pop %v394
        %v396 = vmul.f32 %v394, %v395
        %v397 = vsub.f32 1.0, %v396
        %v398 = vmul.f32 %v395, %v397
        %v399 = vadd.f32 %v395, %v398
        %vm400 = vweird.f32 %v394
        %vm401 = vweird.f32 %v395
        %vm402 = vmor %vm400, %vm401
        %v403 = vsel %vm402, %v395, %v399
        %v404 = vand.u32 2147483647, %v394
        %vm405 = vcmp.eq.f32.partialorder %v404, 8.507059e+37
        %v406 = vand.u32 %v394, 2147483648
        %v407 = vor.u32 1.1754944e-38, %v406
        %v408 = vsel %vm405, %v407, %v403
        %v409 = vmul.f32 %v361, %v408
        %410 = vst [vmem:[%s271] sm:$0xff] %v409
        %p411 = scmp.lt.s32.totalorder %s19, 1
        %s412 = scalar_select %p411, %s19, 1
        %s413 = smul.addr %s412, 8
        %s414 = scalar_lea.vmem %s5, %s413
        // Predicated region
        $region57: #{pade_rkan_forward.1} parent=39 // pred_check
          %p415 = pneg %p147
        $region58: #{pade_rkan_forward.1} parent=39 // pred_check_branch
          %417 = sbr.rel (%p415) target = $region60
        $region59: #{pade_rkan_forward.1} parent=39 // pred_region
          _
        $region60: #{pade_rkan_forward.1} parent=39 // pred_fallthru
          _
      $region40: #{pade_rkan_forward.1} parent=5 // pred_fallthru
        _
      %p418 = scmp.le.s32.totalorder 2, %s14
      // Predicated region
      $region61: #{pade_rkan_forward.1} parent=5 // pred_check
        %p419 = pneg %p418
      $region62: #{pade_rkan_forward.1} parent=5 // pred_check_branch
        %421 = sbr.rel (%p419) target = $region64
      $region63: #{pade_rkan_forward.1} parent=5 // pred_region
        %s422 = ssub.s32 %s14, 2
        // Predicated region
        $region65: #{pade_rkan_forward.1} parent=63 // pred_check
          %p423 = pneg %p153
        $region66: #{pade_rkan_forward.1} parent=63 // pred_check_branch
          %425 = sbr.rel (%p423) target = $region68
        $region67: #{pade_rkan_forward.1} parent=63 // pred_region
          %p426 = scmp.lt.s32.totalorder %s20, 1
          %s427 = scalar_select %p426, %s20, 1
          %s428 = smul.addr %s427, 8
          %s429 = scalar_lea.vmem %s5, %s428
        $region68: #{pade_rkan_forward.1} parent=63 // pred_fallthru
          _
      $region64: #{pade_rkan_forward.1} parent=5 // pred_fallthru
        _
    $region6: #{pade_rkan_forward.1} parent=1 // loop_footer
      %s18 = sadd.s32 1, %s14
    $region7: #{pade_rkan_forward.1} parent=1 // loop_footer_branch
      %13 = sbr.rel target = $region3
    $region8: #{pade_rkan_forward.1} parent=1 // loop_exit
      _
    %430 = vsyncpa [#allocation3], 1
    %s431 = scalar_lea.sflag [#allocation3], 1
    %432 = vsyncpa %s431, 1
    %433 = vsyncpa [#allocation5], 1
    %434 = vsyncpa [#allocation8], 1

</llo_original>
